<compile_context>
chip_gen: v5e
topology: v5e:2x2
jax: 0.10.0
libtpu: 0.0.40
codegen_flags: <defaults>
</compile_context>

<pallas_src>
import jax
import jax.numpy as jnp
from jax import lax
from jax.experimental import pallas as pl
from jax.experimental.pallas import tpu as pltpu


def gauss_kernel(x_ref, w_ref, xn_ref, wn_ref, b_ref, o_ref, acc_ref):
    # x_ref : (TB, TK)  input tile (batch x feature)
    # w_ref : (TN, TK)  center tile (rows = centers, cols = features)
    # xn_ref: (TB, 1)   0.5*||x_b||^2, f32, precomputed in the wrapper
    # wn_ref: (1, TN)   0.5*||w_i||^2, f32, precomputed in the wrapper
    # b_ref : (1, TN)   bias tile
    # o_ref : (TB, TN)  output tile
    # acc_ref:(TB, TN)  f32 accumulator of x.w, resident over the K axis
    k = pl.program_id(2)

    # Pure MXU work in the inner loop: contract the feature axes of x and w.
    dot = lax.dot_general(
        x_ref[...], w_ref[...], (((1,), (1,)), ((), ())),
        preferred_element_type=jnp.float32)

    @pl.when(k == 0)
    def _first():
        acc_ref[...] = dot            # direct write: saves a zero-init store

    @pl.when(k != 0)
    def _accum():
        acc_ref[...] += dot           # bare dot-accumulate (MRB-friendly)

    @pl.when(k == pl.num_programs(2) - 1)
    def _finalize():
        # exp(-0.5*||x-w||^2) = exp(x.w - 0.5||x||^2 - 0.5||w||^2)
        e = acc_ref[...] - xn_ref[...] - wn_ref[...]
        e = jnp.minimum(e, 0.0)       # clamp: true exponent is <= 0
        o_ref[...] = (jnp.exp(e) + b_ref[...].astype(jnp.float32)).astype(
            o_ref.dtype)


def _round_up(v, m):
    return -(-v // m) * m


def _pick_tile(dim, preferred, align):
    """min(preferred, dim rounded up to `align`); always an `align` multiple."""
    return min(_round_up(preferred, align), _round_up(dim, align))


def gauss_layer(x, weights, biases, *, tile_b=512, tile_n=512, tile_k=2048):
    B, D_in = x.shape
    d_in_w, D_out = weights.shape
    assert D_in == d_in_w and D_in == D_out, (
        "torch GaussKernelLayer broadcasting requires input_dim == output_dim")
    out_dtype = x.dtype

    # Tile sizes: lane axes (tn, tk) aligned to 128, batch sublane axis to 8.
    tb = _pick_tile(B, tile_b, 8)
    tn = _pick_tile(D_out, tile_n, 128)
    tk = _pick_tile(D_in, tile_k, 128)

    Bp = _round_up(B, tb)
    Np = _round_up(D_out, tn)
    Kp = _round_up(D_in, tk)

    # Zero-pad to tile multiples.  Zero feature padding leaves x.w and the
    # norms exact; padded batch rows / center columns are sliced off below.
    xp = jnp.zeros((Bp, Kp), x.dtype).at[:B, :D_in].set(x)
    wp = jnp.zeros((Np, Kp), weights.dtype).at[:d_in_w, :D_out].set(weights)
    bp = jnp.zeros((1, Np), biases.dtype).at[0, :D_out].set(biases)

    # Hoisted norm terms (f32), computed once per call in the wrapper.
    xf = xp.astype(jnp.float32)
    wf = wp.astype(jnp.float32)
    half_xn = 0.5 * jnp.sum(xf * xf, axis=1, keepdims=True)      # (Bp, 1)
    half_wn = 0.5 * jnp.sum(wf * wf, axis=1, keepdims=True).T    # (1, Np)

    grid = (Bp // tb, Np // tn, Kp // tk)

    # VMEM budget: double-buffered x/w/out tiles + f32 accumulator + norms.
    in_item = jnp.dtype(x.dtype).itemsize
    out_item = jnp.dtype(out_dtype).itemsize
    footprint = (2 * (tb * tk + tn * tk) * in_item
                 + 2 * tb * tn * out_item
                 + tb * tn * 4
                 + 4 * (tb + 2 * tn))
    vmem_limit = int(min(max(2 * footprint, 32 * 1024 * 1024),
                         100 * 1024 * 1024))

    out = pl.pallas_call(
        gauss_kernel,
        out_shape=jax.ShapeDtypeStruct((Bp, Np), out_dtype),
        grid_spec=pltpu.PrefetchScalarGridSpec(
            num_scalar_prefetch=0,
            grid=grid,
            in_specs=[
                pl.BlockSpec((tb, tk), lambda b, n, k: (b, k)),   # x tile
                pl.BlockSpec((tn, tk), lambda b, n, k: (n, k)),   # center tile
                pl.BlockSpec((tb, 1), lambda b, n, k: (b, 0)),    # 0.5||x||^2
                pl.BlockSpec((1, tn), lambda b, n, k: (0, n)),    # 0.5||w||^2
                pl.BlockSpec((1, tn), lambda b, n, k: (0, n)),    # bias
            ],
            out_specs=pl.BlockSpec((tb, tn), lambda b, n, k: (b, n)),
            scratch_shapes=[pltpu.VMEM((tb, tn), jnp.float32)],
        ),
        compiler_params=pltpu.CompilerParams(
            dimension_semantics=("parallel", "parallel", "arbitrary"),
            vmem_limit_bytes=vmem_limit),
    )(xp, wp, half_xn, half_wn, bp)

    if (Bp, Np) != (B, D_out):
        out = out[:B, :D_out]
    return out


def gauss_layer_ref(x, weights, biases):
    xf = x.astype(jnp.float32)
    wf = weights.astype(jnp.float32)
    diff = xf[:, None, :] - wf[None, :, :]
    s = jnp.sum(diff * diff, axis=2)
    return (jnp.exp(-0.5 * s) + biases[None, :].astype(jnp.float32)).astype(
        x.dtype)


if __name__ == "__main__":
    # input_dim == output_dim == D (required by the torch broadcast).
    B, D = 8, 256
    key = jax.random.PRNGKey(0)
    kx, kw, kb = jax.random.split(key, 3)
    # Scale down so exp(-0.5 * ||x - w||^2) is non-trivially far from zero.
    x = 0.1 * jax.random.normal(kx, (B, D), dtype=jnp.float32)
    weights = 0.1 * jax.random.normal(kw, (D, D), dtype=jnp.float32)
    biases = jax.random.normal(kb, (D,), dtype=jnp.float32)

    # Small tiles here exercise both the N tiling and the K accumulation path.
    out = gauss_layer(x, weights, biases, tile_b=256, tile_n=128, tile_k=128)
    out = jax.block_until_ready(out)

    ref = gauss_layer_ref(x, weights, biases)
    assert out.shape == (B, D)
    assert jnp.allclose(out, ref, atol=1e-3, rtol=1e-3), float(
        jnp.max(jnp.abs(out - ref)))
    print("KERNEL_OK")
</pallas_src>

<mosaic_0001>
module attributes {stable_mosaic.version = 11 : i64} {
  func.func @gauss_kernel(%arg0: i32, %arg1: i32, %arg2: i32, %arg3: memref<8x128xf32, #tpu.memory_space<vmem>>, %arg4: memref<128x128xf32, #tpu.memory_space<vmem>>, %arg5: memref<8x1xf32, #tpu.memory_space<vmem>>, %arg6: memref<1x128xf32, #tpu.memory_space<vmem>>, %arg7: memref<1x128xf32, #tpu.memory_space<vmem>>, %arg8: memref<8x128xf32, #tpu.memory_space<vmem>>, %arg9: memref<8x128xf32, #tpu.memory_space<vmem>>) attributes {dimension_semantics = [#tpu.dimension_semantics<parallel>, #tpu.dimension_semantics<parallel>, #tpu.dimension_semantics<arbitrary>], iteration_bounds = array<i64: 1, 2, 2>, scalar_prefetch = 0 : i64, scratch_operands = 1 : i64, tpu.core_type = #tpu.core_type<tc>, window_params = [{transform_indices = @transform_0, window_bounds = array<i64: 8, 128>}, {transform_indices = @transform_1, window_bounds = array<i64: 128, 128>}, {transform_indices = @transform_2, window_bounds = array<i64: 8, 1>}, {transform_indices = @transform_3, window_bounds = array<i64: 1, 128>}, {transform_indices = @transform_4, window_bounds = array<i64: 1, 128>}, {transform_indices = @transform_5, window_bounds = array<i64: 8, 128>}]} {
    %c0 = arith.constant 0 : index
    %c0_0 = arith.constant 0 : index
    %0 = vector.load %arg3[%c0, %c0_0] : memref<8x128xf32, #tpu.memory_space<vmem>>, vector<8x128xf32>
    %c0_1 = arith.constant 0 : index
    %c0_2 = arith.constant 0 : index
    %1 = vector.load %arg4[%c0_1, %c0_2] : memref<128x128xf32, #tpu.memory_space<vmem>>, vector<128x128xf32>
    %cst = arith.constant dense<0.000000e+00> : vector<8x128xf32>
    %2 = tpu.matmul %0, %1, %cst {dimension_numbers = #tpu.dot_dimension_numbers<[1], [1], [0], [0], [0, 0, 1, 0], [], []>} : vector<8x128xf32>, vector<128x128xf32>, vector<8x128xf32> -> vector<8x128xf32>
    %c0_i32 = arith.constant 0 : i32
    %3 = arith.cmpi eq, %arg2, %c0_i32 : i32
    %4 = arith.extui %3 : i1 to i32
    %c0_i32_3 = arith.constant 0 : i32
    %5 = arith.cmpi ne, %4, %c0_i32_3 : i32
    scf.if %5 {
      %c0_7 = arith.constant 0 : index
      %c0_8 = arith.constant 0 : index
      %12 = vector.load %arg9[%c0_7, %c0_8] : memref<8x128xf32, #tpu.memory_space<vmem>>, vector<8x128xf32>
      tpu.vector_store %arg9[%c0_7, %c0_8], %2 {strides = array<i32>} : memref<8x128xf32, #tpu.memory_space<vmem>>, vector<8x128xf32>,
    } else {
    }
    %c0_i32_4 = arith.constant 0 : i32
    %6 = arith.cmpi ne, %arg2, %c0_i32_4 : i32
    %7 = arith.extui %6 : i1 to i32
    %c0_i32_5 = arith.constant 0 : i32
    %8 = arith.cmpi ne, %7, %c0_i32_5 : i32
    scf.if %8 {
      %c0_7 = arith.constant 0 : index
      %c0_8 = arith.constant 0 : index
      %12 = vector.load %arg9[%c0_7, %c0_8] : memref<8x128xf32, #tpu.memory_space<vmem>>, vector<8x128xf32>
      %13 = arith.addf %12, %2 : vector<8x128xf32>
      %c0_9 = arith.constant 0 : index
      %c0_10 = arith.constant 0 : index
      %14 = vector.load %arg9[%c0_9, %c0_10] : memref<8x128xf32, #tpu.memory_space<vmem>>, vector<8x128xf32>
      tpu.vector_store %arg9[%c0_9, %c0_10], %13 {strides = array<i32>} : memref<8x128xf32, #tpu.memory_space<vmem>>, vector<8x128xf32>,
    } else {
    }
    %c1_i32 = arith.constant 1 : i32
    %9 = arith.cmpi eq, %arg2, %c1_i32 : i32
    %10 = arith.extui %9 : i1 to i32
    %c0_i32_6 = arith.constant 0 : i32
    %11 = arith.cmpi ne, %10, %c0_i32_6 : i32
    scf.if %11 {
      %c0_7 = arith.constant 0 : index
      %c0_8 = arith.constant 0 : index
      %12 = vector.load %arg9[%c0_7, %c0_8] : memref<8x128xf32, #tpu.memory_space<vmem>>, vector<8x128xf32>
      %c0_9 = arith.constant 0 : index
      %c0_10 = arith.constant 0 : index
      %13 = vector.load %arg5[%c0_9, %c0_10] : memref<8x1xf32, #tpu.memory_space<vmem>>, vector<8x1xf32>
      %14 = vector.broadcast %13 : vector<8x1xf32> to vector<8x128xf32>
      %15 = arith.subf %12, %14 : vector<8x128xf32>
      %c0_11 = arith.constant 0 : index
      %c0_12 = arith.constant 0 : index
      %16 = vector.load %arg6[%c0_11, %c0_12] : memref<1x128xf32, #tpu.memory_space<vmem>>, vector<1x128xf32>
      %17 = vector.broadcast %16 : vector<1x128xf32> to vector<8x128xf32>
      %18 = arith.subf %15, %17 : vector<8x128xf32>
      %cst_13 = arith.constant 0.000000e+00 : f32
      %19 = vector.broadcast %cst_13 : f32 to vector<8x128xf32>
      %20 = arith.minimumf %18, %19 : vector<8x128xf32>
      %21 = math.exp %20 : vector<8x128xf32>
      %c0_14 = arith.constant 0 : index
      %c0_15 = arith.constant 0 : index
      %22 = vector.load %arg7[%c0_14, %c0_15] : memref<1x128xf32, #tpu.memory_space<vmem>>, vector<1x128xf32>
      %23 = vector.broadcast %22 : vector<1x128xf32> to vector<8x128xf32>
      %24 = arith.addf %21, %23 : vector<8x128xf32>
      %c0_16 = arith.constant 0 : index
      %c0_17 = arith.constant 0 : index
      %25 = vector.load %arg8[%c0_16, %c0_17] : memref<8x128xf32, #tpu.memory_space<vmem>>, vector<8x128xf32>
      tpu.vector_store %arg8[%c0_16, %c0_17], %24 {strides = array<i32>} : memref<8x128xf32, #tpu.memory_space<vmem>>, vector<8x128xf32>,
    } else {
    }
    return
  }
  func.func @transform_0(%arg0: i32, %arg1: i32, %arg2: i32) -> (i32, i32) {
    %c0_i32 = arith.constant 0 : i32
    return %arg0, %arg2 : i32, i32
  }
  func.func @transform_1(%arg0: i32, %arg1: i32, %arg2: i32) -> (i32, i32) {
    %c0_i32 = arith.constant 0 : i32
    return %arg1, %arg2 : i32, i32
  }
  func.func @transform_2(%arg0: i32, %arg1: i32, %arg2: i32) -> (i32, i32) {
    %c0_i32 = arith.constant 0 : i32
    %c0_i32_0 = arith.constant 0 : i32
    return %arg0, %c0_i32 : i32, i32
  }
  func.func @transform_3(%arg0: i32, %arg1: i32, %arg2: i32) -> (i32, i32) {
    %c0_i32 = arith.constant 0 : i32
    %c0_i32_0 = arith.constant 0 : i32
    return %c0_i32, %arg1 : i32, i32
  }
  func.func @transform_4(%arg0: i32, %arg1: i32, %arg2: i32) -> (i32, i32) {
    %c0_i32 = arith.constant 0 : i32
    %c0_i32_0 = arith.constant 0 : i32
    return %c0_i32, %arg1 : i32, i32
  }
  func.func @transform_5(%arg0: i32, %arg1: i32, %arg2: i32) -> (i32, i32) {
    %c0_i32 = arith.constant 0 : i32
    return %arg0, %arg1 : i32, i32
  }
}

</mosaic_0001>

<llo_original>
// kernel: tpu_custom_call.1
$region0: #{tpu_custom_call.1}
  #allocation0 [shape = 'u32[]', space=smem, size = 0x4, offset = 0x4, fixed_abs, tag = 'smem constant byte address 0x4 - core index']
  #allocation1 [shape = 'u32[72,128]{1,0:T(1,128)}', space=vmem, size = 0x9000, scoped, tag = 'internal scratch']
  #allocation2 [shape = 'f32[8,128]{1,0:T(8,128)}', space=vmem, size = 0x1000, scoped, tag = 'scratch operand']
  %s0 = inlined_call_operand.hbm [shape: f32[8,256], index: 0, kind: input, shape index: {}]
  %s1 = inlined_call_operand.hbm [shape: f32[256,256], index: 1, kind: input, shape index: {}]
  %s2 = inlined_call_operand.vmem [shape: f32[8,1], index: 2, kind: input, shape index: {}]
  %s3 = inlined_call_operand.vmem [shape: f32[1,256], index: 3, kind: input, shape index: {}]
  %s4 = inlined_call_operand.vmem [shape: f32[1,256], index: 4, kind: input, shape index: {}]
  %s5 = inlined_call_operand.hbm [shape: f32[8,256], index: 5, kind: output, shape index: {}]
  %s6 = sld [smem:[#allocation0]]
  $region73: #{tpu_custom_call.1} parent=0
    _
  %s8 = ssub.s32 1, %s6
  %s9 = scalar_select 0, %s8, %s6
  $region1: #{tpu_custom_call.1} parent=0
    #allocation3 [shape = 'u8[8192]{0}', space=vmem, size = 0x2000, scoped, tag = 'input window, operand 0']
    #allocation4 [shape = 's32[2]{0}', space=sflag, size = 0x8, scoped, tag = 'scoped memory for tpu_custom_call.1']
    #allocation5 [shape = 's32[2]{0}', space=sflag, size = 0x8, scoped, tag = 'scoped memory for tpu_custom_call.1']
    #allocation6 [shape = 'u8[131072]{0}', space=vmem, size = 0x20000, scoped, tag = 'input window, operand 1']
    #allocation7 [shape = 's32[2]{0}', space=sflag, size = 0x8, scoped, tag = 'scoped memory for tpu_custom_call.1']
    #allocation8 [shape = 'u8[8192]{0}', space=vmem, size = 0x2000, scoped, tag = 'output window, operand 0']
    %10 = vsyncpa [#allocation4], 0
    %s11 = scalar_lea.sflag [#allocation4], 1
    %12 = vsyncpa %s11, 0
    %13 = vsyncpa [#allocation7], 0
    %s14 = scalar_lea.sflag [#allocation7], 1
    %15 = vsyncpa %s14, 0
    %16 = vsyncpa [#allocation5], 0
    %s17 = scalar_lea.sflag [#allocation5], 1
    %18 = vsyncpa %s17, 0
    loop: start=0, step=1, limit=6
    $region2: #{tpu_custom_call.1} parent=1 // loop_pre_header
      _
    $region3: #{tpu_custom_call.1} parent=1 // loop_header
      %s20 = sphi 0, %s24
      %p21 = scmp.ge.s32.totalorder %s20, 6
      %s27 = sphi 0, %s46
      %s28 = sphi 0, %s42
      %s29 = sphi 0, %s38
      %s30 = sphi 0, %s27
      %s31 = sphi 0, %s28
      %s32 = sphi 0, %s29
      %s33 = sphi 0, %s30
      %s34 = sphi 0, %s31
      %s35 = sphi 0, %s32
      %s51 = sphi 0, %s53
      %s54 = sphi 0, %s51
      %s55 = sphi 0, %s54
      %s71 = sphi 0, %s55
      %s79 = sphi 0, %s81
      %s82 = sphi 0, %s79
      %s83 = sphi 0, %s82
      %s99 = sphi 0, %s83
      %s105 = sphi 0, %s107
      %s108 = sphi 0, %s105
      %s109 = sphi 0, %s108
      %s125 = sphi 0, %s109
      %s131 = sphi 0, %s133
      %s134 = sphi 0, %s131
      %s135 = sphi 0, %s134
      %s151 = sphi 0, %s135
      %s157 = sphi 0, %s159
      %s160 = sphi 0, %s157
      %s161 = sphi 0, %s160
      %s177 = sphi 0, %s161
      %s185 = sphi 0, %s187
      %s188 = sphi 0, %s185
      %s189 = sphi 0, %s188
      %s205 = sphi 0, %s189
    $region4: #{tpu_custom_call.1} parent=1 // loop_header_branch
      %23 = sbr.rel (%p21) target = $region8
    $region5: #{tpu_custom_call.1} parent=1 // loop_body
      %s25 = ssub.s32 %s20, 1
      %s26 = ssub.s32 %s20, 2
      %s36 = sadd.s32 1, %s29
      %p37 = scmp.ge.s32.totalorder %s36, 2
      %s38 = scalar_select %p37, 0, %s36
      %s39 = sadd.s32 1, %s28
      %s40 = scalar_select %p37, %s39, %s28
      %p41 = scmp.ge.s32.totalorder %s40, 2
      %s42 = scalar_select %p41, 0, %s40
      %s43 = sadd.s32 1, %s27
      %s44 = scalar_select %p41, %s43, %s27
      %p45 = scmp.ge.s32.totalorder %s44, 1
      %s46 = scalar_select %p45, 0, %s44
      %s47 = ssub.s32 %s27, %s46
      %s48 = ssub.s32 %s29, %s38
      %s49 = sor.u32 %s47, %s48
      %p50 = scmp.eq.s32.totalorder %s49, 0
      %s52 = sadd.s32 %s51, 1
      %s53 = scalar_select %p50, %s51, %s52
      %p56 = pneg %p50
      %p57 = scmp.eq.s32.totalorder %s20, 3
      %p58 = por %p56, %p57
      %p59 = scmp.ne.s32.totalorder %s51, %s54
      %p60 = scmp.eq.s32.totalorder %s20, 0
      %p61 = por %p59, %p60
      %p62 = scmp.ne.s32.totalorder %s51, %s54
      %p63 = scmp.eq.s32.totalorder %s25, 3
      %p64 = por %p62, %p63
      %p65 = scmp.ne.s32.totalorder %s54, %s55
      %p66 = scmp.eq.s32.totalorder %s25, 0
      %p67 = por %p65, %p66
      %p68 = scmp.ne.s32.totalorder %s54, %s55
      %p69 = scmp.eq.s32.totalorder %s26, 3
      %p70 = por %p68, %p69
      %p72 = scmp.ne.s32.totalorder %s55, %s71
      %p73 = scmp.eq.s32.totalorder %s26, 0
      %p74 = por %p72, %p73
      %s75 = ssub.s32 %s28, %s42
      %s76 = ssub.s32 %s29, %s38
      %s77 = sor.u32 %s75, %s76
      %p78 = scmp.eq.s32.totalorder %s77, 0
      %s80 = sadd.s32 %s79, 1
      %s81 = scalar_select %p78, %s79, %s80
      %p84 = pneg %p78
      %p85 = scmp.eq.s32.totalorder %s20, 3
      %p86 = por %p84, %p85
      %p87 = scmp.ne.s32.totalorder %s79, %s82
      %p88 = scmp.eq.s32.totalorder %s20, 0
      %p89 = por %p87, %p88
      %p90 = scmp.ne.s32.totalorder %s79, %s82
      %p91 = scmp.eq.s32.totalorder %s25, 3
      %p92 = por %p90, %p91
      %p93 = scmp.ne.s32.totalorder %s82, %s83
      %p94 = scmp.eq.s32.totalorder %s25, 0
      %p95 = por %p93, %p94
      %p96 = scmp.ne.s32.totalorder %s82, %s83
      %p97 = scmp.eq.s32.totalorder %s26, 3
      %p98 = por %p96, %p97
      %p100 = scmp.ne.s32.totalorder %s83, %s99
      %p101 = scmp.eq.s32.totalorder %s26, 0
      %p102 = por %p100, %p101
      %s103 = ssub.s32 %s27, %s46
      %p104 = scmp.eq.s32.totalorder %s103, 0
      %s106 = sadd.s32 %s105, 1
      %s107 = scalar_select %p104, %s105, %s106
      %p110 = pneg %p104
      %p111 = scmp.eq.s32.totalorder %s20, 3
      %p112 = por %p110, %p111
      %p113 = scmp.ne.s32.totalorder %s105, %s108
      %p114 = scmp.eq.s32.totalorder %s20, 0
      %p115 = por %p113, %p114
      %p116 = scmp.ne.s32.totalorder %s105, %s108
      %p117 = scmp.eq.s32.totalorder %s25, 3
      %p118 = por %p116, %p117
      %p119 = scmp.ne.s32.totalorder %s108, %s109
      %p120 = scmp.eq.s32.totalorder %s25, 0
      %p121 = por %p119, %p120
      %p122 = scmp.ne.s32.totalorder %s108, %s109
      %p123 = scmp.eq.s32.totalorder %s26, 3
      %p124 = por %p122, %p123
      %p126 = scmp.ne.s32.totalorder %s109, %s125
      %p127 = scmp.eq.s32.totalorder %s26, 0
      %p128 = por %p126, %p127
      %s129 = ssub.s32 %s28, %s42
      %p130 = scmp.eq.s32.totalorder %s129, 0
      %s132 = sadd.s32 %s131, 1
      %s133 = scalar_select %p130, %s131, %s132
      %p136 = pneg %p130
      %p137 = scmp.eq.s32.totalorder %s20, 3
      %p138 = por %p136, %p137
      %p139 = scmp.ne.s32.totalorder %s131, %s134
      %p140 = scmp.eq.s32.totalorder %s20, 0
      %p141 = por %p139, %p140
      %p142 = scmp.ne.s32.totalorder %s131, %s134
      %p143 = scmp.eq.s32.totalorder %s25, 3
      %p144 = por %p142, %p143
      %p145 = scmp.ne.s32.totalorder %s134, %s135
      %p146 = scmp.eq.s32.totalorder %s25, 0
      %p147 = por %p145, %p146
      %p148 = scmp.ne.s32.totalorder %s134, %s135
      %p149 = scmp.eq.s32.totalorder %s26, 3
      %p150 = por %p148, %p149
      %p152 = scmp.ne.s32.totalorder %s135, %s151
      %p153 = scmp.eq.s32.totalorder %s26, 0
      %p154 = por %p152, %p153
      %s155 = ssub.s32 %s28, %s42
      %p156 = scmp.eq.s32.totalorder %s155, 0
      %s158 = sadd.s32 %s157, 1
      %s159 = scalar_select %p156, %s157, %s158
      %p162 = pneg %p156
      %p163 = scmp.eq.s32.totalorder %s20, 3
      %p164 = por %p162, %p163
      %p165 = scmp.ne.s32.totalorder %s157, %s160
      %p166 = scmp.eq.s32.totalorder %s20, 0
      %p167 = por %p165, %p166
      %p168 = scmp.ne.s32.totalorder %s157, %s160
      %p169 = scmp.eq.s32.totalorder %s25, 3
      %p170 = por %p168, %p169
      %p171 = scmp.ne.s32.totalorder %s160, %s161
      %p172 = scmp.eq.s32.totalorder %s25, 0
      %p173 = por %p171, %p172
      %p174 = scmp.ne.s32.totalorder %s160, %s161
      %p175 = scmp.eq.s32.totalorder %s26, 3
      %p176 = por %p174, %p175
      %p178 = scmp.ne.s32.totalorder %s161, %s177
      %p179 = scmp.eq.s32.totalorder %s26, 0
      %p180 = por %p178, %p179
      %s181 = ssub.s32 %s27, %s46
      %s182 = ssub.s32 %s28, %s42
      %s183 = sor.u32 %s181, %s182
      %p184 = scmp.eq.s32.totalorder %s183, 0
      %s186 = sadd.s32 %s185, 1
      %s187 = scalar_select %p184, %s185, %s186
      %p190 = pneg %p184
      %p191 = scmp.eq.s32.totalorder %s20, 3
      %p192 = por %p190, %p191
      %p193 = scmp.ne.s32.totalorder %s185, %s188
      %p194 = scmp.eq.s32.totalorder %s20, 0
      %p195 = por %p193, %p194
      %p196 = scmp.ne.s32.totalorder %s185, %s188
      %p197 = scmp.eq.s32.totalorder %s25, 3
      %p198 = por %p196, %p197
      %p199 = scmp.ne.s32.totalorder %s188, %s189
      %p200 = scmp.eq.s32.totalorder %s25, 0
      %p201 = por %p199, %p200
      %p202 = scmp.ne.s32.totalorder %s188, %s189
      %p203 = scmp.eq.s32.totalorder %s26, 3
      %p204 = por %p202, %p203
      %p206 = scmp.ne.s32.totalorder %s189, %s205
      %p207 = scmp.eq.s32.totalorder %s26, 0
      %p208 = por %p206, %p207
      %p209 = scmp.le.s32.totalorder 1, %s20
      %p210 = scmp.lt.s32.totalorder %s20, 5
      %p211 = pnand %p209, %p210
      %p212 = pneg %p211
      // Predicated region
      $region9: #{tpu_custom_call.1} parent=5 // pred_check
        _
      $region10: #{tpu_custom_call.1} parent=5 // pred_check_branch
        %214 = sbr.rel (%p211) target = $region12
      $region11: #{tpu_custom_call.1} parent=5 // pred_region
        %s215 = ssub.s32 %s20, 1
        // Predicated region
        $region13: #{tpu_custom_call.1} parent=11 // pred_check
          %p216 = pneg %p121
        $region14: #{tpu_custom_call.1} parent=11 // pred_check_branch
          %218 = sbr.rel (%p216) target = $region16
        $region15: #{tpu_custom_call.1} parent=11 // pred_region
          %p219 = scmp.lt.s32.totalorder %s30, 0
          %s220 = scalar_select %p219, %s30, 0
          %s221 = smul.addr %s220, 8
          %s222 = scalar_lea.vmem %s2, %s221
        $region16: #{tpu_custom_call.1} parent=11 // pred_fallthru
          _
      $region12: #{tpu_custom_call.1} parent=5 // pred_fallthru
        _
      %p223 = scmp.lt.s32.totalorder %s20, 4
      // Predicated region
      $region17: #{tpu_custom_call.1} parent=5 // pred_check
        %p224 = pneg %p223
      $region18: #{tpu_custom_call.1} parent=5 // pred_check_branch
        %226 = sbr.rel (%p224) target = $region20
      $region19: #{tpu_custom_call.1} parent=5 // pred_region
        // Predicated region
        $region21: #{tpu_custom_call.1} parent=19 // pred_check
          %p227 = pneg %p61
        $region22: #{tpu_custom_call.1} parent=19 // pred_check_branch
          %229 = sbr.rel (%p227) target = $region24
        $region23: #{tpu_custom_call.1} parent=19 // pred_region
          %s230 = sand.u32 %s51, 1
          %s231 = scalar_lea.sflag [#allocation4], %s230
          %s232 = sand.u32 %s51, 1
          %s233 = smul.addr %s232, 8
          %s234 = scalar_lea.vmem [#allocation3], %s233
          %236 = vsyncadd %s231, 0
          %s237 = smul.addr %s27, 2
          %s238 = sadd.s32 %s29, %s237
          %s239 = smul.addr %s238, 8
          %s240 = scalar_lea.hbm %s0, %s239
          %s242 = sshll.u32 %s240, 4
          %s243 = int_to_ptr.hbm [resolvable:$true] %s242
          %s244 = sshll.u32 %s234, 4
          %s245 = int_to_ptr.vmem [resolvable:$true] %s244
          %247 = dma.hbm_to_vmem [thread:$0]  %s243, 128, %s245, %s231
        $region24: #{tpu_custom_call.1} parent=19 // pred_fallthru
          _
        // Predicated region
        $region25: #{tpu_custom_call.1} parent=19 // pred_check
          %p248 = pneg %p89
        $region26: #{tpu_custom_call.1} parent=19 // pred_check_branch
          %250 = sbr.rel (%p248) target = $region28
        $region27: #{tpu_custom_call.1} parent=19 // pred_region
          %s251 = sand.u32 %s79, 1
          %s252 = scalar_lea.sflag [#allocation7], %s251
          %s253 = sand.u32 %s79, 1
          %s254 = smul.addr %s253, 128
          %s255 = scalar_lea.vmem [#allocation6], %s254
          %s256 = smul.u32 16, %s28
          %258 = vsyncadd %s252, 0
          %s259 = smul.addr %s256, 2
          %s260 = sadd.s32 %s29, %s259
          %s261 = smul.addr %s260, 8
          %s262 = scalar_lea.hbm %s1, %s261
          %s263 = sshll.u32 %s262, 4
          %s264 = int_to_ptr.hbm [resolvable:$true] %s263
          %s265 = sshll.u32 %s255, 4
          %s266 = int_to_ptr.vmem [resolvable:$true] %s265
          %271 = dma.hbm_to_vmem [thread:$0]  %s264, 2048, %s266, %s252, 256, 128, 8
        $region28: #{tpu_custom_call.1} parent=19 // pred_fallthru
          _
        // Predicated region
        $region29: #{tpu_custom_call.1} parent=19 // pred_check
          %p272 = pneg %p141
        $region30: #{tpu_custom_call.1} parent=19 // pred_check_branch
          %274 = sbr.rel (%p272) target = $region32
        $region31: #{tpu_custom_call.1} parent=19 // pred_region
          %p275 = scmp.lt.s32.totalorder %s28, 1
          %s276 = scalar_select %p275, %s28, 1
          %s277 = scalar_lea.vmem %s3, %s276
        $region32: #{tpu_custom_call.1} parent=19 // pred_fallthru
          _
        // Predicated region
        $region33: #{tpu_custom_call.1} parent=19 // pred_check
          %p278 = pneg %p167
        $region34: #{tpu_custom_call.1} parent=19 // pred_check_branch
          %280 = sbr.rel (%p278) target = $region36
        $region35: #{tpu_custom_call.1} parent=19 // pred_region
          %p281 = scmp.lt.s32.totalorder %s28, 1
          %s282 = scalar_select %p281, %s28, 1
          %s283 = scalar_lea.vmem %s4, %s282
        $region36: #{tpu_custom_call.1} parent=19 // pred_fallthru
          _
      $region20: #{tpu_custom_call.1} parent=5 // pred_fallthru
        _
      %p284 = scmp.le.s32.totalorder 1, %s20
      %p285 = scmp.lt.s32.totalorder %s20, 5
      %p286 = pnand %p284, %p285
      %p287 = pneg %p286
      // Predicated region
      $region37: #{tpu_custom_call.1} parent=5 // pred_check
        _
      $region38: #{tpu_custom_call.1} parent=5 // pred_check_branch
        %289 = sbr.rel (%p286) target = $region40
      $region39: #{tpu_custom_call.1} parent=5 // pred_region
        %s290 = ssub.s32 %s20, 1
        %s291 = sand.u32 %s54, 1
        %s292 = scalar_lea.sflag [#allocation4], %s291
        %s293 = sand.u32 %s54, 1
        %s294 = smul.addr %s293, 8
        %s295 = scalar_lea.vmem [#allocation3], %s294
        // Predicated region
        $region41: #{tpu_custom_call.1} parent=39 // pred_check
          %p296 = pneg %p67
        $region42: #{tpu_custom_call.1} parent=39 // pred_check_branch
          %298 = sbr.rel (%p296) target = $region44
        $region43: #{tpu_custom_call.1} parent=39 // pred_region
          %300 = dma.done %s292, 128
        $region44: #{tpu_custom_call.1} parent=39 // pred_fallthru
          _
        %s301 = sand.u32 %s82, 1
        %s302 = scalar_lea.sflag [#allocation7], %s301
        %s303 = sand.u32 %s82, 1
        %s304 = smul.addr %s303, 128
        %s305 = scalar_lea.vmem [#allocation6], %s304
        // Predicated region
        $region45: #{tpu_custom_call.1} parent=39 // pred_check
          %p306 = pneg %p95
        $region46: #{tpu_custom_call.1} parent=39 // pred_check_branch
          %308 = sbr.rel (%p306) target = $region48
        $region47: #{tpu_custom_call.1} parent=39 // pred_region
          %310 = dma.done %s302, 2048
        $region48: #{tpu_custom_call.1} parent=39 // pred_fallthru
          _
        %s311 = sand.u32 %s54, 1
        %s312 = scalar_lea.sflag [#allocation4], %s311
        %s313 = sand.u32 %s54, 1
        %s314 = smul.addr %s313, 8
        %s315 = scalar_lea.vmem [#allocation3], %s314
        %p316 = pneg %p67
        %p317 = pneg %p64
        %s318 = sand.u32 %s82, 1
        %s319 = scalar_lea.sflag [#allocation7], %s318
        %s320 = sand.u32 %s82, 1
        %s321 = smul.addr %s320, 128
        %s322 = scalar_lea.vmem [#allocation6], %s321
        %p323 = pneg %p95
        %p324 = pneg %p92
        %p325 = scmp.lt.s32.totalorder %s30, 0
        %s326 = scalar_select %p325, %s30, 0
        %s327 = smul.addr %s326, 8
        %s328 = scalar_lea.vmem %s2, %s327
        %p329 = pneg %p121
        %p330 = pneg %p118
        %p331 = scmp.lt.s32.totalorder %s31, 1
        %s332 = scalar_select %p331, %s31, 1
        %s333 = scalar_lea.vmem %s3, %s332
        %p334 = pneg %p147
        %p335 = pneg %p144
        %p336 = scmp.lt.s32.totalorder %s31, 1
        %s337 = scalar_select %p336, %s31, 1
        %s338 = scalar_lea.vmem %s4, %s337
        %p339 = pneg %p173
        %p340 = pneg %p170
        %p341 = pneg %p201
        %p342 = pneg %p198
        %s343 = sand.u32 %s188, 1
        %s344 = scalar_lea.sflag [#allocation5], %s343
        %s345 = sand.u32 %s188, 1
        %s346 = smul.addr %s345, 8
        %s347 = scalar_lea.vmem [#allocation8], %s346
        %s348 = smul.u32 16, %s31
        %p349 = scmp.lt.s32.totalorder %s30, 0
        %s350 = scalar_select %p349, %s30, 0
        %s351 = smul.addr %s350, 8
        %s352 = scalar_lea.vmem %s2, %s351
        %p353 = scmp.lt.s32.totalorder %s31, 1
        %s354 = scalar_select %p353, %s31, 1
        %s355 = scalar_lea.vmem %s3, %s354
        %p356 = scmp.lt.s32.totalorder %s31, 1
        %s357 = scalar_select %p356, %s31, 1
        %s358 = scalar_lea.vmem %s4, %s357
        %v359 = vld [vmem:[%s295] sm:$0xff]
        %v360 = vld [vmem:[%s305] sm:$0xff]
        %v361 = vld [vmem:[%s305 + $0x8] sm:$0xff]
        %v362 = vld [vmem:[%s305 + $0x10] sm:$0xff]
        %v363 = vld [vmem:[%s305 + $0x18] sm:$0xff]
        %v364 = vld [vmem:[%s305 + $0x20] sm:$0xff]
        %v365 = vld [vmem:[%s305 + $0x28] sm:$0xff]
        %v366 = vld [vmem:[%s305 + $0x30] sm:$0xff]
        %v367 = vld [vmem:[%s305 + $0x38] sm:$0xff]
        %v368 = vld [vmem:[%s305 + $0x40] sm:$0xff]
        %v369 = vld [vmem:[%s305 + $0x48] sm:$0xff]
        %v370 = vld [vmem:[%s305 + $0x50] sm:$0xff]
        %v371 = vld [vmem:[%s305 + $0x58] sm:$0xff]
        %v372 = vld [vmem:[%s305 + $0x60] sm:$0xff]
        %v373 = vld [vmem:[%s305 + $0x68] sm:$0xff]
        %v374 = vld [vmem:[%s305 + $0x70] sm:$0xff]
        %v375 = vld [vmem:[%s305 + $0x78] sm:$0xff]
        %376 = vmatpush.xpose.msra.mxu0 %v375
        %377 = vmatpush.xpose.msra.mxu0 %v374
        %378 = vmatpush.xpose.msra.mxu0 %v373
        %379 = vmatpush.xpose.msra.mxu0 %v372
        %380 = vmatpush.xpose.msra.mxu0 %v371
        %381 = vmatpush.xpose.msra.mxu0 %v370
        %382 = vmatpush.xpose.msra.mxu0 %v369
        %383 = vmatpush.xpose.msra.mxu0 %v368
        %384 = vmatpush.xpose.msra.mxu0 %v367
        %385 = vmatpush.xpose.msra.mxu0 %v366
        %386 = vmatpush.xpose.msra.mxu0 %v365
        %387 = vmatpush.xpose.msra.mxu0 %v364
        %388 = vmatpush.xpose.msra.mxu0 %v363
        %389 = vmatpush.xpose.msra.mxu0 %v362
        %390 = vmatpush.xpose.msra.mxu0 %v361
        %391 = vmatpush.xpose.msra.mxu0 %v360
        %392 = vmatmul.f32.gmra.mxu0 %v359
        %v393 = vpop.f32.mrf.mxu0
        %v394 = vadd.f32 0.0, %v393
        %395 = vdwg.mxu0
        %p396 = scmp.eq.s32.totalorder %s32, 0
        // Predicated region
        $region49: #{tpu_custom_call.1} parent=39 // pred_check
          %p397 = pneg %p396
        $region50: #{tpu_custom_call.1} parent=39 // pred_check_branch
          %399 = sbr.rel (%p397) target = $region52
        $region51: #{tpu_custom_call.1} parent=39 // pred_region
          %400 = vst [vmem:[#allocation2] sm:$0xff] %v394
        $region52: #{tpu_custom_call.1} parent=39 // pred_fallthru
          _
        %p401 = scmp.ne.s32.totalorder %s32, 0
        // Predicated region
        $region53: #{tpu_custom_call.1} parent=39 // pred_check
          %p402 = pneg %p401
        $region54: #{tpu_custom_call.1} parent=39 // pred_check_branch
          %404 = sbr.rel (%p402) target = $region56
        $region55: #{tpu_custom_call.1} parent=39 // pred_region
          %v405 = vld [vmem:[#allocation2] sm:$0xff]
          %v406 = vadd.f32 %v405, %v394
          %407 = vst [vmem:[#allocation2] sm:$0xff] %v406
        $region56: #{tpu_custom_call.1} parent=39 // pred_fallthru
          _
        %p408 = scmp.eq.s32.totalorder %s32, 1
        // Predicated region
        $region57: #{tpu_custom_call.1} parent=39 // pred_check
          %p409 = pneg %p408
        $region58: #{tpu_custom_call.1} parent=39 // pred_check_branch
          %411 = sbr.rel (%p409) target = $region60
        $region59: #{tpu_custom_call.1} parent=39 // pred_region
          %v412 = vld [vmem:[#allocation2] sm:$0xff]
          %v413 = vld [vmem:[%s352] sm:$0xff]
          %415 = vset.pattern.permute.xlu0 0
          %416 = vperm.xlu0 %415, %v413
          %v417 = vpop.permute.xlu0 %416
          %v419 = vsub.f32 %v412, %v417
          %v420 = vld [vmem:[%s355] sm:$0x1]
          %v422 = vperm.slane %v420, 0
          %v424 = vsub.f32 %v419, %v422
          %v425 = vmin.f32 %v424, 0.0
          %v426 = vmul.f32 %v425, 1.442695
          %v427 = vpow.pop %v426
          %v428 = vld [vmem:[%s358] sm:$0x1]
          %v430 = vperm.slane %v428, 0
          %v432 = vadd.f32 %v427, %v430
          %433 = vst [vmem:[%s347] sm:$0xff] %v432
        $region60: #{tpu_custom_call.1} parent=39 // pred_fallthru
          _
        %s434 = sand.u32 %s188, 1
        %s435 = scalar_lea.sflag [#allocation5], %s434
        %s436 = sand.u32 %s188, 1
        %s437 = smul.addr %s436, 8
        %s438 = scalar_lea.vmem [#allocation8], %s437
        // Predicated region
        $region61: #{tpu_custom_call.1} parent=39 // pred_check
          %p439 = pneg %p198
        $region62: #{tpu_custom_call.1} parent=39 // pred_check_branch
          %441 = sbr.rel (%p439) target = $region64
        $region63: #{tpu_custom_call.1} parent=39 // pred_region
          %443 = vsyncadd %s435, 0
          %s444 = smul.addr %s30, 2
          %s445 = sadd.s32 %s31, %s444
          %s446 = smul.addr %s445, 8
          %s447 = scalar_lea.hbm %s5, %s446
          %s449 = sshll.u32 %s438, 4
          %s450 = int_to_ptr.vmem [resolvable:$true] %s449
          %s451 = sshll.u32 %s447, 4
          %s452 = int_to_ptr.hbm [resolvable:$true] %s451
          %454 = dma.vmem_to_hbm [thread:$0]  %s450, 128, %s452, %s435
        $region64: #{tpu_custom_call.1} parent=39 // pred_fallthru
          _
      $region40: #{tpu_custom_call.1} parent=5 // pred_fallthru
        _
      %p455 = scmp.le.s32.totalorder 2, %s20
      // Predicated region
      $region65: #{tpu_custom_call.1} parent=5 // pred_check
        %p456 = pneg %p455
      $region66: #{tpu_custom_call.1} parent=5 // pred_check_branch
        %458 = sbr.rel (%p456) target = $region68
      $region67: #{tpu_custom_call.1} parent=5 // pred_region
        %s459 = ssub.s32 %s20, 2
        // Predicated region
        $region69: #{tpu_custom_call.1} parent=67 // pred_check
          %p460 = pneg %p204
        $region70: #{tpu_custom_call.1} parent=67 // pred_check_branch
          %462 = sbr.rel (%p460) target = $region72
        $region71: #{tpu_custom_call.1} parent=67 // pred_region
          %s463 = sand.u32 %s189, 1
          %s464 = scalar_lea.sflag [#allocation5], %s463
          %s465 = sand.u32 %s189, 1
          %s466 = smul.addr %s465, 8
          %s467 = scalar_lea.vmem [#allocation8], %s466
          %469 = dma.done %s464, 128
        $region72: #{tpu_custom_call.1} parent=67 // pred_fallthru
          _
      $region68: #{tpu_custom_call.1} parent=5 // pred_fallthru
        _
    $region6: #{tpu_custom_call.1} parent=1 // loop_footer
      %s24 = sadd.s32 1, %s20
    $region7: #{tpu_custom_call.1} parent=1 // loop_footer_branch
      %19 = sbr.rel target = $region3
    $region8: #{tpu_custom_call.1} parent=1 // loop_exit
      _
    %470 = vsyncpa [#allocation4], 1
    %s471 = scalar_lea.sflag [#allocation4], 1
    %472 = vsyncpa %s471, 1
    %473 = vsyncpa [#allocation7], 1
    %s474 = scalar_lea.sflag [#allocation7], 1
    %475 = vsyncpa %s474, 1
    %476 = vsyncpa [#allocation5], 1
    %s477 = scalar_lea.sflag [#allocation5], 1
    %478 = vsyncpa %s477, 1

</llo_original>
